<compile_context>
chip_gen: v5e
topology: v5e:2x2
jax: 0.10.0
libtpu: 0.0.40
codegen_flags: <defaults>
</compile_context>

<pallas_src>
import math
import jax
import jax.numpy as jnp
from jax.experimental import pallas as pl
from jax.experimental.pallas import tpu as pltpu

BN_EPS = 1e-5
PAD = 128          # lane width of every packed field / weight output dim
HALF = PAD // 2    # mu | sig split point inside the fused fc3 slab
K_PAD = 64         # contraction-dim padding of every weight slab (real K <= 64)

# slab indices inside the packed weight blob (8, K_PAD, PAD)
(W_FC, W_1, W_2, W_MS, W_4, W_5, W_6, W_7) = range(8)
# row indices inside the packed vector blob (rows, PAD)
(V_G0, V_BT0, V_G1, V_BT1, V_G2, V_BT2, V_BMS,
 V_G4, V_BT4, V_G5, V_BT5, V_G6, V_BT6, V_B7) = range(14)
N_VEC = 14


# --------------------------------- kernel ----------------------------------
def vae_kernel(acts_ref, wts_ref, vecs_ref, out_ref):
    k = wts_ref.shape[1]                       # static contraction width (64)

    def vec(i):                                # (1, 128) f32 row
        return vecs_ref[i:i + 1, :]

    def mm(a, wi):                             # bf16 MXU matmul, f32 accumulate
        return jnp.dot(a[:, :k].astype(jnp.bfloat16), wts_ref[wi],
                       preferred_element_type=jnp.float32)

    def bn_relu(h, gi, bi):
        # training-mode BatchNorm1d folded into one FMA; variance clamped >= 0
        m = jnp.mean(h, axis=0, keepdims=True)
        v = jnp.maximum(jnp.mean(h * h, axis=0, keepdims=True) - m * m, 0.0)
        scale = vec(gi) * jax.lax.rsqrt(v + BN_EPS)
        shift = vec(bi) - m * scale
        return jnp.maximum(h * scale + shift, 0.0)

    xcs = acts_ref[:, 0 * PAD:1 * PAD]     # concat(x, code, struc), zero-padded
    cshift = acts_ref[:, 1 * PAD:2 * PAD]  # [0]*latent | code | struc | 0s
    eps = acts_ref[:, 2 * PAD:3 * PAD]     # reparameterization noise, padded

    # ------------------------------ encoder -------------------------------
    # linear biases feeding training-mode BN are dropped (cancelled by mean)
    o1 = bn_relu(mm(xcs, W_FC), V_G0, V_BT0)
    o2 = bn_relu(mm(o1, W_1), V_G1, V_BT1)
    o3 = bn_relu(mm(o2, W_2), V_G2, V_BT2)

    ms = mm(o3, W_MS) + vec(V_BMS)             # fused [mu | sig] heads
    mu = ms[:, :HALF]
    s = ms[:, HALF:]
    sig = jnp.maximum(s, 0.0) + jnp.log1p(jnp.exp(-jnp.abs(s)))   # softplus

    # ------------------------- reparameterization -------------------------
    z = mu + jnp.exp(sig * 0.5) * eps[:, :HALF]

    # ------------------------------ decoder -------------------------------
    zc = z + cshift[:, :HALF]                  # [z | code | struc | 0s]
    o4 = bn_relu(mm(zc, W_4), V_G4, V_BT4)
    o5 = bn_relu(mm(o4, W_5), V_G5, V_BT5)
    o6 = bn_relu(mm(o5, W_6), V_G6, V_BT6)
    out7 = jax.nn.sigmoid(mm(o6, W_7) + vec(V_B7))

    # lane-dense packed output: [ out7 (128) | mu|sig (64+64) ]
    out_ref[:, 0 * PAD:1 * PAD] = out7
    out_ref[:, 1 * PAD:2 * PAD] = jnp.concatenate([mu, sig], axis=-1)


# ------------------------------ host wrapper -------------------------------
def vae_forward(x, code, struc, eps, wts, vecs, x_size, latent_size):
    """x/code/struc/eps: (G, B, feat). Each of the G groups is one independent
    BN batch (one module.forward call)."""
    G, B = x.shape[0], x.shape[1]

    def pad_lanes(a):
        return jnp.pad(a, ((0, 0), (0, PAD - a.shape[1])))

    xcs = jnp.concatenate([x, code, struc], axis=-1).reshape(G * B, -1)
    cond = jnp.concatenate([code, struc], axis=-1).reshape(G * B, -1)
    cshift = jnp.concatenate(
        [jnp.zeros((G * B, latent_size), jnp.float32), cond], axis=-1)
    acts = jnp.concatenate([
        pad_lanes(xcs),
        pad_lanes(cshift),
        pad_lanes(eps.reshape(G * B, -1)),
    ], axis=-1)                                                   # (G*B, 3*PAD)

    NW = wts.shape[0]
    NV = vecs.shape[0]
    packed = pl.pallas_call(
        vae_kernel,
        out_shape=jax.ShapeDtypeStruct((G * B, 2 * PAD), jnp.float32),
        grid=(G,),
        in_specs=[
            pl.BlockSpec((B, 3 * PAD), lambda g: (g, 0)),           # per-group acts
            pl.BlockSpec((NW, K_PAD, PAD), lambda g: (0, 0, 0)),    # weights resident
            pl.BlockSpec((NV, PAD), lambda g: (0, 0)),              # vectors resident
        ],
        out_specs=pl.BlockSpec((B, 2 * PAD), lambda g: (g, 0)),
        compiler_params=pltpu.CompilerParams(
            dimension_semantics=("parallel",)),
    )(acts, wts, vecs)

    out = packed[:, :x_size].reshape(G, B, x_size)
    mu = packed[:, PAD:PAD + latent_size].reshape(G, B, latent_size)
    sig = packed[:, PAD + HALF:PAD + HALF + latent_size].reshape(G, B, latent_size)
    return out, mu, sig


# --------------------------- parameter packing -----------------------------
def pack_params(raw, hidden_sizes, condition_size):
    """Pack raw per-layer params into (wts, vecs) blobs for the kernel."""
    (wf, bf, g0, bt0,
     w1, b1, g1, bt1,
     w2, b2, g2, bt2,
     wmu, bmu, wsig, bsig,
     w4, b4, g4, bt4,
     w5, b5, g5, bt5,
     w6, b6, g6, bt6,
     w7, b7) = raw
    h0, h1, h2, h3 = hidden_sizes
    latent = h3

    assert max(w.shape[0] for w in (wf, w1, w2, wmu, wsig, w4, w5, w6, w7)) <= K_PAD
    assert max(w.shape[1] for w in (wf, w1, w2, w4, w5, w6, w7)) <= PAD
    assert latent <= HALF and latent + condition_size <= HALF

    def padw(w):
        return jnp.pad(w, ((0, K_PAD - w.shape[0]), (0, PAD - w.shape[1])))

    # fused mu|sig head: columns [0:latent]=wmu, [HALF:HALF+latent]=wsig
    zcol = jnp.zeros((h2, HALF - latent), jnp.float32)
    w_ms = jnp.concatenate([wmu, zcol, wsig, zcol], axis=1)        # (h2, 128)

    wts = jnp.stack([padw(w) for w in (wf, w1, w2, w_ms, w4, w5, w6, w7)]
                    ).astype(jnp.bfloat16)                         # (8, 64, 128)

    def padv(v):
        return jnp.pad(v, (0, PAD - v.shape[0]))

    zv = jnp.zeros((HALF - latent,), jnp.float32)
    b_ms = jnp.concatenate([bmu, zv, bsig, zv])                    # (128,)

    # biases bf,b1,b2,b4,b5,b6 omitted: cancelled by training-mode BatchNorm
    vec_list = (g0, bt0, g1, bt1, g2, bt2, b_ms,
                g4, bt4, g5, bt5, g6, bt6, b7)
    vecs = jnp.stack([padv(v) for v in vec_list]).astype(jnp.float32)
    nv_pad = -(-vecs.shape[0] // 8) * 8                            # sublane-align rows
    vecs = jnp.pad(vecs, ((0, nv_pad - vecs.shape[0]), (0, 0)))
    return wts, vecs


# ------------------------- deterministic param init ------------------------
def init_params(key, input_size, hidden_sizes, condition_size):
    """Raw per-layer params, PyTorch-default-style init."""
    h0, h1, h2, h3 = hidden_sizes
    x_size = input_size - condition_size
    keys = iter(jax.random.split(key, 40))

    def linear(fan_in, fan_out):
        k = 1.0 / math.sqrt(fan_in)
        w = jax.random.uniform(next(keys), (fan_in, fan_out), jnp.float32, -k, k)
        b = jax.random.uniform(next(keys), (fan_out,), jnp.float32, -k, k)
        return w, b

    def bn(dim):
        return jnp.ones((dim,), jnp.float32), jnp.zeros((dim,), jnp.float32)

    wf, bf = linear(input_size, h0); g0, bt0 = bn(h0)
    w1, b1 = linear(h0, h1);         g1, bt1 = bn(h1)
    w2, b2 = linear(h1, h2);         g2, bt2 = bn(h2)
    wmu, bmu = linear(h2, h3)
    wsig, bsig = linear(h2, h3)
    w4, b4 = linear(h3 + condition_size, h2); g4, bt4 = bn(h2)
    w5, b5 = linear(h2, h1);         g5, bt5 = bn(h1)
    w6, b6 = linear(h1, h0);         g6, bt6 = bn(h0)
    w7, b7 = linear(h0, x_size)

    return [wf, bf, g0, bt0,
            w1, b1, g1, bt1,
            w2, b2, g2, bt2,
            wmu, bmu, wsig, bsig,
            w4, b4, g4, bt4,
            w5, b5, g5, bt5,
            w6, b6, g6, bt6,
            w7, b7]


# ---------------------------- pure-JAX reference ----------------------------
def _ref_forward(x, code, struc, eps, raw, h3):
    """Module semantics for ONE batch, dots mirroring the kernel's bf16 MXU."""
    (wf, bf, g0, bt0, w1, b1, g1, bt1, w2, b2, g2, bt2,
     wmu, bmu, wsig, bsig, w4, b4, g4, bt4,
     w5, b5, g5, bt5, w6, b6, g6, bt6, w7, b7) = raw

    def dot(a, w):
        return jnp.dot(a.astype(jnp.bfloat16), w.astype(jnp.bfloat16),
                       preferred_element_type=jnp.float32)

    def bn(h, g, b):
        m = h.mean(0, keepdims=True)
        v = ((h - m) ** 2).mean(0, keepdims=True)
        return (h - m) * (g * jax.lax.rsqrt(v + BN_EPS)) + b

    xcs = jnp.concatenate([x, code, struc], -1)
    cond = jnp.concatenate([code, struc], -1)
    o1 = jax.nn.relu(bn(dot(xcs, wf) + bf, g0, bt0))
    o2 = jax.nn.relu(bn(dot(o1, w1) + b1, g1, bt1))
    o3 = jax.nn.relu(bn(dot(o2, w2) + b2, g2, bt2))
    mu = dot(o3, wmu) + bmu
    sig = jax.nn.softplus(dot(o3, wsig) + bsig)
    z = mu + jnp.exp(sig * 0.5) * eps
    zfull = jnp.concatenate([z, cond], -1)
    o4 = jax.nn.relu(bn(dot(zfull, w4) + b4, g4, bt4))
    o5 = jax.nn.relu(bn(dot(o4, w5) + b5, g5, bt5))
    o6 = jax.nn.relu(bn(dot(o5, w6) + b6, g6, bt6))
    return jax.nn.sigmoid(dot(o6, w7) + b7), mu, sig


# ----------------------------------- main -----------------------------------
if __name__ == "__main__":
    # small shapes consistent with the module
    input_size = 64
    hidden_sizes = (32, 32, 32, 16)
    condition_size = 16          # code_size=8, struc_size=8
    code_size = 8
    struc_size = condition_size - code_size
    x_size = input_size - condition_size
    latent_size = hidden_sizes[-1]
    G, B = 4, 8                  # 4 independent BN batches of 8 samples per call

    root = jax.random.PRNGKey(0)
    k_x, k_c, k_s, k_e, k_p = jax.random.split(root, 5)
    x = jax.random.normal(k_x, (G, B, x_size), jnp.float32)
    code = jax.random.normal(k_c, (G, B, code_size), jnp.float32)
    struc = jax.random.normal(k_s, (G, B, struc_size), jnp.float32)
    eps = jax.random.normal(k_e, (G, B, latent_size), jnp.float32)  # randn_like(mu)

    raw = init_params(k_p, input_size, hidden_sizes, condition_size)
    wts, vecs = pack_params(raw, hidden_sizes, condition_size)

    fwd = jax.jit(vae_forward, static_argnums=(6, 7))
    out, mu, sig = fwd(x, code, struc, eps, wts, vecs, x_size, latent_size)
    jax.block_until_ready((out, mu, sig))

    # correctness: each group must match one independent module.forward batch,
    # against a reference that mirrors the kernel's bf16-in/f32-acc MXU dots
    for g in range(G):
        out_r, mu_r, sig_r = _ref_forward(x[g], code[g], struc[g], eps[g],
                                          raw, hidden_sizes[3])
        assert jnp.allclose(out[g], out_r, atol=1e-2, rtol=1e-2)
        assert jnp.allclose(mu[g], mu_r, atol=1e-2, rtol=1e-2)
        assert jnp.allclose(sig[g], sig_r, atol=1e-2, rtol=1e-2)

    print("KERNEL_OK")
</pallas_src>

<mosaic_0001>
module attributes {stable_mosaic.version = 11 : i64} {
  func.func @vae_kernel(%arg0: i32, %arg1: memref<8x384xf32, #tpu.memory_space<vmem>>, %arg2: memref<8x64x128xbf16, #tpu.memory_space<vmem>>, %arg3: memref<16x128xf32, #tpu.memory_space<vmem>>, %arg4: memref<8x256xf32, #tpu.memory_space<vmem>>) attributes {dimension_semantics = [#tpu.dimension_semantics<parallel>], iteration_bounds = array<i64: 4>, scalar_prefetch = 0 : i64, scratch_operands = 0 : i64, tpu.core_type = #tpu.core_type<tc>, window_params = [{transform_indices = @transform_0, window_bounds = array<i64: 8, 384>}, {pipeline_mode = #tpu.pipeline_mode<synchronous>, transform_indices = @transform_1, window_bounds = array<i64: 8, 64, 128>}, {pipeline_mode = #tpu.pipeline_mode<synchronous>, transform_indices = @transform_2, window_bounds = array<i64: 16, 128>}, {transform_indices = @transform_3, window_bounds = array<i64: 8, 256>}]} {
    %c0 = arith.constant 0 : index
    %c0_0 = arith.constant 0 : index
    %0 = vector.load %arg1[%c0, %c0_0] : memref<8x384xf32, #tpu.memory_space<vmem>>, vector<8x128xf32>
    %c0_1 = arith.constant 0 : index
    %c128 = arith.constant 128 : index
    %1 = vector.load %arg1[%c0_1, %c128] : memref<8x384xf32, #tpu.memory_space<vmem>>, vector<8x128xf32>
    %c0_2 = arith.constant 0 : index
    %c256 = arith.constant 256 : index
    %2 = vector.load %arg1[%c0_2, %c256] : memref<8x384xf32, #tpu.memory_space<vmem>>, vector<8x128xf32>
    %3 = vector.extract_strided_slice %0 {offsets = [0, 0], sizes = [8, 64], strides = [1, 1]} : vector<8x128xf32> to vector<8x64xf32>
    %4 = arith.truncf %3 : vector<8x64xf32> to vector<8x64xbf16>
    %c0_3 = arith.constant 0 : index
    %c0_4 = arith.constant 0 : index
    %c0_5 = arith.constant 0 : index
    %5 = vector.load %arg2[%c0_3, %c0_4, %c0_5] : memref<8x64x128xbf16, #tpu.memory_space<vmem>>, vector<1x64x128xbf16>
    %6 = vector.shape_cast %5 : vector<1x64x128xbf16> to vector<64x128xbf16>
    %cst = arith.constant dense<0.000000e+00> : vector<8x128xf32>
    %7 = tpu.matmul %4, %6, %cst {dimension_numbers = #tpu.dot_dimension_numbers<[1], [0], [0], [1], [0, 0, 1, 1], [], []>} : vector<8x64xbf16>, vector<64x128xbf16>, vector<8x128xf32> -> vector<8x128xf32>
    %cst_6 = arith.constant dense<0.000000e+00> : vector<128xf32>
    %8 = vector.multi_reduction <add>, %7, %cst_6 [0] : vector<8x128xf32> to vector<128xf32>
    %9 = vector.shape_cast %8 : vector<128xf32> to vector<1x128xf32>
    %cst_7 = arith.constant 8.000000e+00 : f32
    %10 = vector.broadcast %cst_7 : f32 to vector<1x128xf32>
    %11 = arith.divf %9, %10 : vector<1x128xf32>
    %12 = arith.mulf %7, %7 : vector<8x128xf32>
    %cst_8 = arith.constant dense<0.000000e+00> : vector<128xf32>
    %13 = vector.multi_reduction <add>, %12, %cst_8 [0] : vector<8x128xf32> to vector<128xf32>
    %14 = vector.shape_cast %13 : vector<128xf32> to vector<1x128xf32>
    %cst_9 = arith.constant 8.000000e+00 : f32
    %15 = vector.broadcast %cst_9 : f32 to vector<1x128xf32>
    %16 = arith.divf %14, %15 : vector<1x128xf32>
    %17 = arith.mulf %11, %11 : vector<1x128xf32>
    %18 = arith.subf %16, %17 : vector<1x128xf32>
    %cst_10 = arith.constant 0.000000e+00 : f32
    %19 = vector.broadcast %cst_10 : f32 to vector<1x128xf32>
    %20 = arith.maximumf %18, %19 : vector<1x128xf32>
    %c0_11 = arith.constant 0 : index
    %c0_12 = arith.constant 0 : index
    %21 = vector.load %arg3[%c0_11, %c0_12] : memref<16x128xf32, #tpu.memory_space<vmem>>, vector<1x128xf32>
    %cst_13 = arith.constant 9.99999974E-6 : f32
    %22 = vector.broadcast %cst_13 : f32 to vector<1x128xf32>
    %23 = arith.addf %20, %22 : vector<1x128xf32>
    %24 = math.rsqrt %23 : vector<1x128xf32>
    %25 = arith.mulf %21, %24 : vector<1x128xf32>
    %c1 = arith.constant 1 : index
    %c0_14 = arith.constant 0 : index
    %26 = vector.load %arg3[%c1, %c0_14] : memref<16x128xf32, #tpu.memory_space<vmem>>, vector<1x128xf32>
    %27 = arith.mulf %11, %25 : vector<1x128xf32>
    %28 = arith.subf %26, %27 : vector<1x128xf32>
    %29 = vector.broadcast %25 : vector<1x128xf32> to vector<8x128xf32>
    %30 = arith.mulf %7, %29 : vector<8x128xf32>
    %31 = vector.broadcast %28 : vector<1x128xf32> to vector<8x128xf32>
    %32 = arith.addf %30, %31 : vector<8x128xf32>
    %cst_15 = arith.constant 0.000000e+00 : f32
    %33 = vector.broadcast %cst_15 : f32 to vector<8x128xf32>
    %34 = arith.maximumf %32, %33 : vector<8x128xf32>
    %35 = vector.extract_strided_slice %34 {offsets = [0, 0], sizes = [8, 64], strides = [1, 1]} : vector<8x128xf32> to vector<8x64xf32>
    %36 = arith.truncf %35 : vector<8x64xf32> to vector<8x64xbf16>
    %c1_16 = arith.constant 1 : index
    %c0_17 = arith.constant 0 : index
    %c0_18 = arith.constant 0 : index
    %37 = vector.load %arg2[%c1_16, %c0_17, %c0_18] : memref<8x64x128xbf16, #tpu.memory_space<vmem>>, vector<1x64x128xbf16>
    %38 = vector.shape_cast %37 : vector<1x64x128xbf16> to vector<64x128xbf16>
    %cst_19 = arith.constant dense<0.000000e+00> : vector<8x128xf32>
    %39 = tpu.matmul %36, %38, %cst_19 {dimension_numbers = #tpu.dot_dimension_numbers<[1], [0], [0], [1], [0, 0, 1, 1], [], []>} : vector<8x64xbf16>, vector<64x128xbf16>, vector<8x128xf32> -> vector<8x128xf32>
    %cst_20 = arith.constant dense<0.000000e+00> : vector<128xf32>
    %40 = vector.multi_reduction <add>, %39, %cst_20 [0] : vector<8x128xf32> to vector<128xf32>
    %41 = vector.shape_cast %40 : vector<128xf32> to vector<1x128xf32>
    %cst_21 = arith.constant 8.000000e+00 : f32
    %42 = vector.broadcast %cst_21 : f32 to vector<1x128xf32>
    %43 = arith.divf %41, %42 : vector<1x128xf32>
    %44 = arith.mulf %39, %39 : vector<8x128xf32>
    %cst_22 = arith.constant dense<0.000000e+00> : vector<128xf32>
    %45 = vector.multi_reduction <add>, %44, %cst_22 [0] : vector<8x128xf32> to vector<128xf32>
    %46 = vector.shape_cast %45 : vector<128xf32> to vector<1x128xf32>
    %cst_23 = arith.constant 8.000000e+00 : f32
    %47 = vector.broadcast %cst_23 : f32 to vector<1x128xf32>
    %48 = arith.divf %46, %47 : vector<1x128xf32>
    %49 = arith.mulf %43, %43 : vector<1x128xf32>
    %50 = arith.subf %48, %49 : vector<1x128xf32>
    %cst_24 = arith.constant 0.000000e+00 : f32
    %51 = vector.broadcast %cst_24 : f32 to vector<1x128xf32>
    %52 = arith.maximumf %50, %51 : vector<1x128xf32>
    %c2 = arith.constant 2 : index
    %c0_25 = arith.constant 0 : index
    %53 = vector.load %arg3[%c2, %c0_25] : memref<16x128xf32, #tpu.memory_space<vmem>>, vector<1x128xf32>
    %cst_26 = arith.constant 9.99999974E-6 : f32
    %54 = vector.broadcast %cst_26 : f32 to vector<1x128xf32>
    %55 = arith.addf %52, %54 : vector<1x128xf32>
    %56 = math.rsqrt %55 : vector<1x128xf32>
    %57 = arith.mulf %53, %56 : vector<1x128xf32>
    %c3 = arith.constant 3 : index
    %c0_27 = arith.constant 0 : index
    %58 = vector.load %arg3[%c3, %c0_27] : memref<16x128xf32, #tpu.memory_space<vmem>>, vector<1x128xf32>
    %59 = arith.mulf %43, %57 : vector<1x128xf32>
    %60 = arith.subf %58, %59 : vector<1x128xf32>
    %61 = vector.broadcast %57 : vector<1x128xf32> to vector<8x128xf32>
    %62 = arith.mulf %39, %61 : vector<8x128xf32>
    %63 = vector.broadcast %60 : vector<1x128xf32> to vector<8x128xf32>
    %64 = arith.addf %62, %63 : vector<8x128xf32>
    %cst_28 = arith.constant 0.000000e+00 : f32
    %65 = vector.broadcast %cst_28 : f32 to vector<8x128xf32>
    %66 = arith.maximumf %64, %65 : vector<8x128xf32>
    %67 = vector.extract_strided_slice %66 {offsets = [0, 0], sizes = [8, 64], strides = [1, 1]} : vector<8x128xf32> to vector<8x64xf32>
    %68 = arith.truncf %67 : vector<8x64xf32> to vector<8x64xbf16>
    %c2_29 = arith.constant 2 : index
    %c0_30 = arith.constant 0 : index
    %c0_31 = arith.constant 0 : index
    %69 = vector.load %arg2[%c2_29, %c0_30, %c0_31] : memref<8x64x128xbf16, #tpu.memory_space<vmem>>, vector<1x64x128xbf16>
    %70 = vector.shape_cast %69 : vector<1x64x128xbf16> to vector<64x128xbf16>
    %cst_32 = arith.constant dense<0.000000e+00> : vector<8x128xf32>
    %71 = tpu.matmul %68, %70, %cst_32 {dimension_numbers = #tpu.dot_dimension_numbers<[1], [0], [0], [1], [0, 0, 1, 1], [], []>} : vector<8x64xbf16>, vector<64x128xbf16>, vector<8x128xf32> -> vector<8x128xf32>
    %cst_33 = arith.constant dense<0.000000e+00> : vector<128xf32>
    %72 = vector.multi_reduction <add>, %71, %cst_33 [0] : vector<8x128xf32> to vector<128xf32>
    %73 = vector.shape_cast %72 : vector<128xf32> to vector<1x128xf32>
    %cst_34 = arith.constant 8.000000e+00 : f32
    %74 = vector.broadcast %cst_34 : f32 to vector<1x128xf32>
    %75 = arith.divf %73, %74 : vector<1x128xf32>
    %76 = arith.mulf %71, %71 : vector<8x128xf32>
    %cst_35 = arith.constant dense<0.000000e+00> : vector<128xf32>
    %77 = vector.multi_reduction <add>, %76, %cst_35 [0] : vector<8x128xf32> to vector<128xf32>
    %78 = vector.shape_cast %77 : vector<128xf32> to vector<1x128xf32>
    %cst_36 = arith.constant 8.000000e+00 : f32
    %79 = vector.broadcast %cst_36 : f32 to vector<1x128xf32>
    %80 = arith.divf %78, %79 : vector<1x128xf32>
    %81 = arith.mulf %75, %75 : vector<1x128xf32>
    %82 = arith.subf %80, %81 : vector<1x128xf32>
    %cst_37 = arith.constant 0.000000e+00 : f32
    %83 = vector.broadcast %cst_37 : f32 to vector<1x128xf32>
    %84 = arith.maximumf %82, %83 : vector<1x128xf32>
    %c4 = arith.constant 4 : index
    %c0_38 = arith.constant 0 : index
    %85 = vector.load %arg3[%c4, %c0_38] : memref<16x128xf32, #tpu.memory_space<vmem>>, vector<1x128xf32>
    %cst_39 = arith.constant 9.99999974E-6 : f32
    %86 = vector.broadcast %cst_39 : f32 to vector<1x128xf32>
    %87 = arith.addf %84, %86 : vector<1x128xf32>
    %88 = math.rsqrt %87 : vector<1x128xf32>
    %89 = arith.mulf %85, %88 : vector<1x128xf32>
    %c5 = arith.constant 5 : index
    %c0_40 = arith.constant 0 : index
    %90 = vector.load %arg3[%c5, %c0_40] : memref<16x128xf32, #tpu.memory_space<vmem>>, vector<1x128xf32>
    %91 = arith.mulf %75, %89 : vector<1x128xf32>
    %92 = arith.subf %90, %91 : vector<1x128xf32>
    %93 = vector.broadcast %89 : vector<1x128xf32> to vector<8x128xf32>
    %94 = arith.mulf %71, %93 : vector<8x128xf32>
    %95 = vector.broadcast %92 : vector<1x128xf32> to vector<8x128xf32>
    %96 = arith.addf %94, %95 : vector<8x128xf32>
    %cst_41 = arith.constant 0.000000e+00 : f32
    %97 = vector.broadcast %cst_41 : f32 to vector<8x128xf32>
    %98 = arith.maximumf %96, %97 : vector<8x128xf32>
    %99 = vector.extract_strided_slice %98 {offsets = [0, 0], sizes = [8, 64], strides = [1, 1]} : vector<8x128xf32> to vector<8x64xf32>
    %100 = arith.truncf %99 : vector<8x64xf32> to vector<8x64xbf16>
    %c3_42 = arith.constant 3 : index
    %c0_43 = arith.constant 0 : index
    %c0_44 = arith.constant 0 : index
    %101 = vector.load %arg2[%c3_42, %c0_43, %c0_44] : memref<8x64x128xbf16, #tpu.memory_space<vmem>>, vector<1x64x128xbf16>
    %102 = vector.shape_cast %101 : vector<1x64x128xbf16> to vector<64x128xbf16>
    %cst_45 = arith.constant dense<0.000000e+00> : vector<8x128xf32>
    %103 = tpu.matmul %100, %102, %cst_45 {dimension_numbers = #tpu.dot_dimension_numbers<[1], [0], [0], [1], [0, 0, 1, 1], [], []>} : vector<8x64xbf16>, vector<64x128xbf16>, vector<8x128xf32> -> vector<8x128xf32>
    %c6 = arith.constant 6 : index
    %c0_46 = arith.constant 0 : index
    %104 = vector.load %arg3[%c6, %c0_46] : memref<16x128xf32, #tpu.memory_space<vmem>>, vector<1x128xf32>
    %105 = vector.broadcast %104 : vector<1x128xf32> to vector<8x128xf32>
    %106 = arith.addf %103, %105 : vector<8x128xf32>
    %107 = vector.extract_strided_slice %106 {offsets = [0, 0], sizes = [8, 64], strides = [1, 1]} : vector<8x128xf32> to vector<8x64xf32>
    %108 = vector.extract_strided_slice %106 {offsets = [0, 64], sizes = [8, 64], strides = [1, 1]} : vector<8x128xf32> to vector<8x64xf32>
    %cst_47 = arith.constant 0.000000e+00 : f32
    %109 = vector.broadcast %cst_47 : f32 to vector<8x64xf32>
    %110 = arith.maximumf %108, %109 : vector<8x64xf32>
    %111 = math.absf %108 : vector<8x64xf32>
    %cst_48 = arith.constant 0.000000e+00 : f32
    %112 = vector.broadcast %cst_48 : f32 to vector<8x64xf32>
    %113 = arith.subf %112, %111 : vector<8x64xf32>
    %114 = math.exp %113 : vector<8x64xf32>
    %115 = math.log1p %114 : vector<8x64xf32>
    %116 = arith.addf %110, %115 : vector<8x64xf32>
    %cst_49 = arith.constant 5.000000e-01 : f32
    %117 = vector.broadcast %cst_49 : f32 to vector<8x64xf32>
    %118 = arith.mulf %116, %117 : vector<8x64xf32>
    %119 = math.exp %118 : vector<8x64xf32>
    %120 = vector.extract_strided_slice %2 {offsets = [0, 0], sizes = [8, 64], strides = [1, 1]} : vector<8x128xf32> to vector<8x64xf32>
    %121 = arith.mulf %119, %120 : vector<8x64xf32>
    %122 = arith.addf %107, %121 : vector<8x64xf32>
    %123 = vector.extract_strided_slice %1 {offsets = [0, 0], sizes = [8, 64], strides = [1, 1]} : vector<8x128xf32> to vector<8x64xf32>
    %124 = arith.addf %122, %123 : vector<8x64xf32>
    %125 = arith.truncf %124 : vector<8x64xf32> to vector<8x64xbf16>
    %c4_50 = arith.constant 4 : index
    %c0_51 = arith.constant 0 : index
    %c0_52 = arith.constant 0 : index
    %126 = vector.load %arg2[%c4_50, %c0_51, %c0_52] : memref<8x64x128xbf16, #tpu.memory_space<vmem>>, vector<1x64x128xbf16>
    %127 = vector.shape_cast %126 : vector<1x64x128xbf16> to vector<64x128xbf16>
    %cst_53 = arith.constant dense<0.000000e+00> : vector<8x128xf32>
    %128 = tpu.matmul %125, %127, %cst_53 {dimension_numbers = #tpu.dot_dimension_numbers<[1], [0], [0], [1], [0, 0, 1, 1], [], []>} : vector<8x64xbf16>, vector<64x128xbf16>, vector<8x128xf32> -> vector<8x128xf32>
    %cst_54 = arith.constant dense<0.000000e+00> : vector<128xf32>
    %129 = vector.multi_reduction <add>, %128, %cst_54 [0] : vector<8x128xf32> to vector<128xf32>
    %130 = vector.shape_cast %129 : vector<128xf32> to vector<1x128xf32>
    %cst_55 = arith.constant 8.000000e+00 : f32
    %131 = vector.broadcast %cst_55 : f32 to vector<1x128xf32>
    %132 = arith.divf %130, %131 : vector<1x128xf32>
    %133 = arith.mulf %128, %128 : vector<8x128xf32>
    %cst_56 = arith.constant dense<0.000000e+00> : vector<128xf32>
    %134 = vector.multi_reduction <add>, %133, %cst_56 [0] : vector<8x128xf32> to vector<128xf32>
    %135 = vector.shape_cast %134 : vector<128xf32> to vector<1x128xf32>
    %cst_57 = arith.constant 8.000000e+00 : f32
    %136 = vector.broadcast %cst_57 : f32 to vector<1x128xf32>
    %137 = arith.divf %135, %136 : vector<1x128xf32>
    %138 = arith.mulf %132, %132 : vector<1x128xf32>
    %139 = arith.subf %137, %138 : vector<1x128xf32>
    %cst_58 = arith.constant 0.000000e+00 : f32
    %140 = vector.broadcast %cst_58 : f32 to vector<1x128xf32>
    %141 = arith.maximumf %139, %140 : vector<1x128xf32>
    %c7 = arith.constant 7 : index
    %c0_59 = arith.constant 0 : index
    %142 = vector.load %arg3[%c7, %c0_59] : memref<16x128xf32, #tpu.memory_space<vmem>>, vector<1x128xf32>
    %cst_60 = arith.constant 9.99999974E-6 : f32
    %143 = vector.broadcast %cst_60 : f32 to vector<1x128xf32>
    %144 = arith.addf %141, %143 : vector<1x128xf32>
    %145 = math.rsqrt %144 : vector<1x128xf32>
    %146 = arith.mulf %142, %145 : vector<1x128xf32>
    %c8 = arith.constant 8 : index
    %c0_61 = arith.constant 0 : index
    %147 = vector.load %arg3[%c8, %c0_61] : memref<16x128xf32, #tpu.memory_space<vmem>>, vector<1x128xf32>
    %148 = arith.mulf %132, %146 : vector<1x128xf32>
    %149 = arith.subf %147, %148 : vector<1x128xf32>
    %150 = vector.broadcast %146 : vector<1x128xf32> to vector<8x128xf32>
    %151 = arith.mulf %128, %150 : vector<8x128xf32>
    %152 = vector.broadcast %149 : vector<1x128xf32> to vector<8x128xf32>
    %153 = arith.addf %151, %152 : vector<8x128xf32>
    %cst_62 = arith.constant 0.000000e+00 : f32
    %154 = vector.broadcast %cst_62 : f32 to vector<8x128xf32>
    %155 = arith.maximumf %153, %154 : vector<8x128xf32>
    %156 = vector.extract_strided_slice %155 {offsets = [0, 0], sizes = [8, 64], strides = [1, 1]} : vector<8x128xf32> to vector<8x64xf32>
    %157 = arith.truncf %156 : vector<8x64xf32> to vector<8x64xbf16>
    %c5_63 = arith.constant 5 : index
    %c0_64 = arith.constant 0 : index
    %c0_65 = arith.constant 0 : index
    %158 = vector.load %arg2[%c5_63, %c0_64, %c0_65] : memref<8x64x128xbf16, #tpu.memory_space<vmem>>, vector<1x64x128xbf16>
    %159 = vector.shape_cast %158 : vector<1x64x128xbf16> to vector<64x128xbf16>
    %cst_66 = arith.constant dense<0.000000e+00> : vector<8x128xf32>
    %160 = tpu.matmul %157, %159, %cst_66 {dimension_numbers = #tpu.dot_dimension_numbers<[1], [0], [0], [1], [0, 0, 1, 1], [], []>} : vector<8x64xbf16>, vector<64x128xbf16>, vector<8x128xf32> -> vector<8x128xf32>
    %cst_67 = arith.constant dense<0.000000e+00> : vector<128xf32>
    %161 = vector.multi_reduction <add>, %160, %cst_67 [0] : vector<8x128xf32> to vector<128xf32>
    %162 = vector.shape_cast %161 : vector<128xf32> to vector<1x128xf32>
    %cst_68 = arith.constant 8.000000e+00 : f32
    %163 = vector.broadcast %cst_68 : f32 to vector<1x128xf32>
    %164 = arith.divf %162, %163 : vector<1x128xf32>
    %165 = arith.mulf %160, %160 : vector<8x128xf32>
    %cst_69 = arith.constant dense<0.000000e+00> : vector<128xf32>
    %166 = vector.multi_reduction <add>, %165, %cst_69 [0] : vector<8x128xf32> to vector<128xf32>
    %167 = vector.shape_cast %166 : vector<128xf32> to vector<1x128xf32>
    %cst_70 = arith.constant 8.000000e+00 : f32
    %168 = vector.broadcast %cst_70 : f32 to vector<1x128xf32>
    %169 = arith.divf %167, %168 : vector<1x128xf32>
    %170 = arith.mulf %164, %164 : vector<1x128xf32>
    %171 = arith.subf %169, %170 : vector<1x128xf32>
    %cst_71 = arith.constant 0.000000e+00 : f32
    %172 = vector.broadcast %cst_71 : f32 to vector<1x128xf32>
    %173 = arith.maximumf %171, %172 : vector<1x128xf32>
    %c9 = arith.constant 9 : index
    %c0_72 = arith.constant 0 : index
    %174 = vector.load %arg3[%c9, %c0_72] : memref<16x128xf32, #tpu.memory_space<vmem>>, vector<1x128xf32>
    %cst_73 = arith.constant 9.99999974E-6 : f32
    %175 = vector.broadcast %cst_73 : f32 to vector<1x128xf32>
    %176 = arith.addf %173, %175 : vector<1x128xf32>
    %177 = math.rsqrt %176 : vector<1x128xf32>
    %178 = arith.mulf %174, %177 : vector<1x128xf32>
    %c10 = arith.constant 10 : index
    %c0_74 = arith.constant 0 : index
    %179 = vector.load %arg3[%c10, %c0_74] : memref<16x128xf32, #tpu.memory_space<vmem>>, vector<1x128xf32>
    %180 = arith.mulf %164, %178 : vector<1x128xf32>
    %181 = arith.subf %179, %180 : vector<1x128xf32>
    %182 = vector.broadcast %178 : vector<1x128xf32> to vector<8x128xf32>
    %183 = arith.mulf %160, %182 : vector<8x128xf32>
    %184 = vector.broadcast %181 : vector<1x128xf32> to vector<8x128xf32>
    %185 = arith.addf %183, %184 : vector<8x128xf32>
    %cst_75 = arith.constant 0.000000e+00 : f32
    %186 = vector.broadcast %cst_75 : f32 to vector<8x128xf32>
    %187 = arith.maximumf %185, %186 : vector<8x128xf32>
    %188 = vector.extract_strided_slice %187 {offsets = [0, 0], sizes = [8, 64], strides = [1, 1]} : vector<8x128xf32> to vector<8x64xf32>
    %189 = arith.truncf %188 : vector<8x64xf32> to vector<8x64xbf16>
    %c6_76 = arith.constant 6 : index
    %c0_77 = arith.constant 0 : index
    %c0_78 = arith.constant 0 : index
    %190 = vector.load %arg2[%c6_76, %c0_77, %c0_78] : memref<8x64x128xbf16, #tpu.memory_space<vmem>>, vector<1x64x128xbf16>
    %191 = vector.shape_cast %190 : vector<1x64x128xbf16> to vector<64x128xbf16>
    %cst_79 = arith.constant dense<0.000000e+00> : vector<8x128xf32>
    %192 = tpu.matmul %189, %191, %cst_79 {dimension_numbers = #tpu.dot_dimension_numbers<[1], [0], [0], [1], [0, 0, 1, 1], [], []>} : vector<8x64xbf16>, vector<64x128xbf16>, vector<8x128xf32> -> vector<8x128xf32>
    %cst_80 = arith.constant dense<0.000000e+00> : vector<128xf32>
    %193 = vector.multi_reduction <add>, %192, %cst_80 [0] : vector<8x128xf32> to vector<128xf32>
    %194 = vector.shape_cast %193 : vector<128xf32> to vector<1x128xf32>
    %cst_81 = arith.constant 8.000000e+00 : f32
    %195 = vector.broadcast %cst_81 : f32 to vector<1x128xf32>
    %196 = arith.divf %194, %195 : vector<1x128xf32>
    %197 = arith.mulf %192, %192 : vector<8x128xf32>
    %cst_82 = arith.constant dense<0.000000e+00> : vector<128xf32>
    %198 = vector.multi_reduction <add>, %197, %cst_82 [0] : vector<8x128xf32> to vector<128xf32>
    %199 = vector.shape_cast %198 : vector<128xf32> to vector<1x128xf32>
    %cst_83 = arith.constant 8.000000e+00 : f32
    %200 = vector.broadcast %cst_83 : f32 to vector<1x128xf32>
    %201 = arith.divf %199, %200 : vector<1x128xf32>
    %202 = arith.mulf %196, %196 : vector<1x128xf32>
    %203 = arith.subf %201, %202 : vector<1x128xf32>
    %cst_84 = arith.constant 0.000000e+00 : f32
    %204 = vector.broadcast %cst_84 : f32 to vector<1x128xf32>
    %205 = arith.maximumf %203, %204 : vector<1x128xf32>
    %c11 = arith.constant 11 : index
    %c0_85 = arith.constant 0 : index
    %206 = vector.load %arg3[%c11, %c0_85] : memref<16x128xf32, #tpu.memory_space<vmem>>, vector<1x128xf32>
    %cst_86 = arith.constant 9.99999974E-6 : f32
    %207 = vector.broadcast %cst_86 : f32 to vector<1x128xf32>
    %208 = arith.addf %205, %207 : vector<1x128xf32>
    %209 = math.rsqrt %208 : vector<1x128xf32>
    %210 = arith.mulf %206, %209 : vector<1x128xf32>
    %c12 = arith.constant 12 : index
    %c0_87 = arith.constant 0 : index
    %211 = vector.load %arg3[%c12, %c0_87] : memref<16x128xf32, #tpu.memory_space<vmem>>, vector<1x128xf32>
    %212 = arith.mulf %196, %210 : vector<1x128xf32>
    %213 = arith.subf %211, %212 : vector<1x128xf32>
    %214 = vector.broadcast %210 : vector<1x128xf32> to vector<8x128xf32>
    %215 = arith.mulf %192, %214 : vector<8x128xf32>
    %216 = vector.broadcast %213 : vector<1x128xf32> to vector<8x128xf32>
    %217 = arith.addf %215, %216 : vector<8x128xf32>
    %cst_88 = arith.constant 0.000000e+00 : f32
    %218 = vector.broadcast %cst_88 : f32 to vector<8x128xf32>
    %219 = arith.maximumf %217, %218 : vector<8x128xf32>
    %220 = vector.extract_strided_slice %219 {offsets = [0, 0], sizes = [8, 64], strides = [1, 1]} : vector<8x128xf32> to vector<8x64xf32>
    %221 = arith.truncf %220 : vector<8x64xf32> to vector<8x64xbf16>
    %c7_89 = arith.constant 7 : index
    %c0_90 = arith.constant 0 : index
    %c0_91 = arith.constant 0 : index
    %222 = vector.load %arg2[%c7_89, %c0_90, %c0_91] : memref<8x64x128xbf16, #tpu.memory_space<vmem>>, vector<1x64x128xbf16>
    %223 = vector.shape_cast %222 : vector<1x64x128xbf16> to vector<64x128xbf16>
    %cst_92 = arith.constant dense<0.000000e+00> : vector<8x128xf32>
    %224 = tpu.matmul %221, %223, %cst_92 {dimension_numbers = #tpu.dot_dimension_numbers<[1], [0], [0], [1], [0, 0, 1, 1], [], []>} : vector<8x64xbf16>, vector<64x128xbf16>, vector<8x128xf32> -> vector<8x128xf32>
    %c13 = arith.constant 13 : index
    %c0_93 = arith.constant 0 : index
    %225 = vector.load %arg3[%c13, %c0_93] : memref<16x128xf32, #tpu.memory_space<vmem>>, vector<1x128xf32>
    %226 = vector.broadcast %225 : vector<1x128xf32> to vector<8x128xf32>
    %227 = arith.addf %224, %226 : vector<8x128xf32>
    %228 = arith.negf %227 : vector<8x128xf32>
    %229 = math.exp %228 : vector<8x128xf32>
    %cst_94 = arith.constant 1.000000e+00 : f32
    %230 = vector.broadcast %cst_94 : f32 to vector<8x128xf32>
    %231 = arith.addf %230, %229 : vector<8x128xf32>
    %232 = arith.divf %230, %231 : vector<8x128xf32>
    %c0_95 = arith.constant 0 : index
    %c0_96 = arith.constant 0 : index
    %233 = vector.load %arg4[%c0_95, %c0_96] : memref<8x256xf32, #tpu.memory_space<vmem>>, vector<8x128xf32>
    tpu.vector_store %arg4[%c0_95, %c0_96], %232 {strides = array<i32>} : memref<8x256xf32, #tpu.memory_space<vmem>>, vector<8x128xf32>,
    %234 = tpu.concatenate %107, %116 in 1 : vector<8x64xf32>, vector<8x64xf32> -> vector<8x128xf32>
    %c0_97 = arith.constant 0 : index
    %c128_98 = arith.constant 128 : index
    %235 = vector.load %arg4[%c0_97, %c128_98] : memref<8x256xf32, #tpu.memory_space<vmem>>, vector<8x128xf32>
    tpu.vector_store %arg4[%c0_97, %c128_98], %234 {strides = array<i32>} : memref<8x256xf32, #tpu.memory_space<vmem>>, vector<8x128xf32>,
    return
  }
  func.func @transform_0(%arg0: i32) -> (i32, i32) {
    %c0_i32 = arith.constant 0 : i32
    %c0_i32_0 = arith.constant 0 : i32
    return %arg0, %c0_i32 : i32, i32
  }
  func.func @transform_1(%arg0: i32) -> (i32, i32, i32) {
    %c0_i32 = arith.constant 0 : i32
    %c0_i32_0 = arith.constant 0 : i32
    %c0_i32_1 = arith.constant 0 : i32
    %c0_i32_2 = arith.constant 0 : i32
    return %c0_i32, %c0_i32_0, %c0_i32_1 : i32, i32, i32
  }
  func.func @transform_2(%arg0: i32) -> (i32, i32) {
    %c0_i32 = arith.constant 0 : i32
    %c0_i32_0 = arith.constant 0 : i32
    %c0_i32_1 = arith.constant 0 : i32
    return %c0_i32, %c0_i32_0 : i32, i32
  }
  func.func @transform_3(%arg0: i32) -> (i32, i32) {
    %c0_i32 = arith.constant 0 : i32
    %c0_i32_0 = arith.constant 0 : i32
    return %arg0, %c0_i32 : i32, i32
  }
}

</mosaic_0001>

<llo_original>
// kernel: vae_forward.1
$region0: #{vae_forward.1}
  #allocation0 [shape = 'u32[]', space=smem, size = 0x4, offset = 0x4, fixed_abs, tag = 'smem constant byte address 0x4 - core index']
  #allocation1 [shape = 'u32[72,128]{1,0:T(1,128)}', space=vmem, size = 0x9000, scoped, tag = 'internal scratch']
  %s0 = inlined_call_operand.vmem [shape: f32[32,384], index: 0, kind: input, shape index: {}]
  %s1 = inlined_call_operand.vmem [shape: bf16[8,64,128], index: 1, kind: input, shape index: {}]
  %s2 = inlined_call_operand.vmem [shape: f32[16,128], index: 2, kind: input, shape index: {}]
  %s3 = inlined_call_operand.vmem [shape: f32[32,256], index: 3, kind: output, shape index: {}]
  %s4 = sld [smem:[#allocation0]]
  $region45: #{vae_forward.1} parent=0
    _
  %s6 = ssub.s32 1, %s4
  %s7 = scalar_select 0, %s6, %s4
  loop: start=0, step=1, limit=6
  $region2: #{vae_forward.1} parent=0 // loop_pre_header
    _
  $region3: #{vae_forward.1} parent=0 // loop_header
    %s9 = sphi 0, %s13
    %p10 = scmp.ge.s32.totalorder %s9, 6
    %s19 = sphi 0, %s21
    %s22 = sphi 0, %s19
    %s23 = sphi 0, %s22
    %s39 = sphi 0, %s23
    %s43 = sphi 0, %s43
    %s45 = sphi 0, %s43
    %s46 = sphi 0, %s45
    %s60 = sphi 0, %s46
    %s64 = sphi 0, %s64
    %s66 = sphi 0, %s64
    %s67 = sphi 0, %s66
    %s81 = sphi 0, %s67
    %s87 = sphi 0, %s89
    %s90 = sphi 0, %s87
    %s91 = sphi 0, %s90
    %s107 = sphi 0, %s91
  $region4: #{vae_forward.1} parent=0 // loop_header_branch
    %12 = sbr.rel (%p10) target = $region8
  $region5: #{vae_forward.1} parent=0 // loop_body
    %s14 = ssub.s32 %s9, 1
    %s15 = ssub.s32 %s9, 2
    %s16 = sadd.s32 %s9, 1
    %s17 = ssub.s32 %s9, %s16
    %p18 = scmp.eq.s32.totalorder %s17, 0
    %s20 = sadd.s32 %s19, 1
    %s21 = scalar_select %p18, %s19, %s20
    %p24 = pneg %p18
    %p25 = scmp.eq.s32.totalorder %s9, 3
    %p26 = por %p24, %p25
    %p27 = scmp.ne.s32.totalorder %s19, %s22
    %p28 = scmp.eq.s32.totalorder %s9, 0
    %p29 = por %p27, %p28
    %p30 = scmp.ne.s32.totalorder %s19, %s22
    %p31 = scmp.eq.s32.totalorder %s14, 3
    %p32 = por %p30, %p31
    %p33 = scmp.ne.s32.totalorder %s22, %s23
    %p34 = scmp.eq.s32.totalorder %s14, 0
    %p35 = por %p33, %p34
    %p36 = scmp.ne.s32.totalorder %s22, %s23
    %p37 = scmp.eq.s32.totalorder %s15, 3
    %p38 = por %p36, %p37
    %p40 = scmp.ne.s32.totalorder %s23, %s39
    %p41 = scmp.eq.s32.totalorder %s15, 0
    %p42 = por %p40, %p41
    %s44 = sadd.s32 %s43, 1
    %p47 = scmp.eq.s32.totalorder %s9, 3
    %p48 = scmp.ne.s32.totalorder %s43, %s45
    %p49 = scmp.eq.s32.totalorder %s9, 0
    %p50 = por %p48, %p49
    %p51 = scmp.ne.s32.totalorder %s43, %s45
    %p52 = scmp.eq.s32.totalorder %s14, 3
    %p53 = por %p51, %p52
    %p54 = scmp.ne.s32.totalorder %s45, %s46
    %p55 = scmp.eq.s32.totalorder %s14, 0
    %p56 = por %p54, %p55
    %p57 = scmp.ne.s32.totalorder %s45, %s46
    %p58 = scmp.eq.s32.totalorder %s15, 3
    %p59 = por %p57, %p58
    %p61 = scmp.ne.s32.totalorder %s46, %s60
    %p62 = scmp.eq.s32.totalorder %s15, 0
    %p63 = por %p61, %p62
    %s65 = sadd.s32 %s64, 1
    %p68 = scmp.eq.s32.totalorder %s9, 3
    %p69 = scmp.ne.s32.totalorder %s64, %s66
    %p70 = scmp.eq.s32.totalorder %s9, 0
    %p71 = por %p69, %p70
    %p72 = scmp.ne.s32.totalorder %s64, %s66
    %p73 = scmp.eq.s32.totalorder %s14, 3
    %p74 = por %p72, %p73
    %p75 = scmp.ne.s32.totalorder %s66, %s67
    %p76 = scmp.eq.s32.totalorder %s14, 0
    %p77 = por %p75, %p76
    %p78 = scmp.ne.s32.totalorder %s66, %s67
    %p79 = scmp.eq.s32.totalorder %s15, 3
    %p80 = por %p78, %p79
    %p82 = scmp.ne.s32.totalorder %s67, %s81
    %p83 = scmp.eq.s32.totalorder %s15, 0
    %p84 = por %p82, %p83
    %s85 = ssub.s32 %s9, %s16
    %p86 = scmp.eq.s32.totalorder %s85, 0
    %s88 = sadd.s32 %s87, 1
    %s89 = scalar_select %p86, %s87, %s88
    %p92 = pneg %p86
    %p93 = scmp.eq.s32.totalorder %s9, 3
    %p94 = por %p92, %p93
    %p95 = scmp.ne.s32.totalorder %s87, %s90
    %p96 = scmp.eq.s32.totalorder %s9, 0
    %p97 = por %p95, %p96
    %p98 = scmp.ne.s32.totalorder %s87, %s90
    %p99 = scmp.eq.s32.totalorder %s14, 3
    %p100 = por %p98, %p99
    %p101 = scmp.ne.s32.totalorder %s90, %s91
    %p102 = scmp.eq.s32.totalorder %s14, 0
    %p103 = por %p101, %p102
    %p104 = scmp.ne.s32.totalorder %s90, %s91
    %p105 = scmp.eq.s32.totalorder %s15, 3
    %p106 = por %p104, %p105
    %p108 = scmp.ne.s32.totalorder %s91, %s107
    %p109 = scmp.eq.s32.totalorder %s15, 0
    %p110 = por %p108, %p109
    %p111 = scmp.le.s32.totalorder 1, %s9
    %p112 = scmp.lt.s32.totalorder %s9, 5
    %p113 = pnand %p111, %p112
    %p114 = pneg %p113
    // Predicated region
    $region9: #{vae_forward.1} parent=5 // pred_check
      _
    $region10: #{vae_forward.1} parent=5 // pred_check_branch
      %116 = sbr.rel (%p113) target = $region12
    $region11: #{vae_forward.1} parent=5 // pred_region
      %s117 = ssub.s32 %s9, 1
      // Predicated region
      $region13: #{vae_forward.1} parent=11 // pred_check
        %p118 = pneg %p56
      $region14: #{vae_forward.1} parent=11 // pred_check_branch
        %120 = sbr.rel (%p118) target = $region16
      $region15: #{vae_forward.1} parent=11 // pred_region
        _
      $region16: #{vae_forward.1} parent=11 // pred_fallthru
        _
      // Predicated region
      $region17: #{vae_forward.1} parent=11 // pred_check
        %p121 = pneg %p77
      $region18: #{vae_forward.1} parent=11 // pred_check_branch
        %123 = sbr.rel (%p121) target = $region20
      $region19: #{vae_forward.1} parent=11 // pred_region
        _
      $region20: #{vae_forward.1} parent=11 // pred_fallthru
        _
    $region12: #{vae_forward.1} parent=5 // pred_fallthru
      _
    %p124 = scmp.lt.s32.totalorder %s9, 4
    // Predicated region
    $region21: #{vae_forward.1} parent=5 // pred_check
      %p125 = pneg %p124
    $region22: #{vae_forward.1} parent=5 // pred_check_branch
      %127 = sbr.rel (%p125) target = $region24
    $region23: #{vae_forward.1} parent=5 // pred_region
      // Predicated region
      $region25: #{vae_forward.1} parent=23 // pred_check
        %p128 = pneg %p29
      $region26: #{vae_forward.1} parent=23 // pred_check_branch
        %130 = sbr.rel (%p128) target = $region28
      $region27: #{vae_forward.1} parent=23 // pred_region
        %p131 = scmp.lt.s32.totalorder %s9, 3
        %s132 = scalar_select %p131, %s9, 3
        %s133 = smul.addr %s132, 3
        %s134 = smul.addr %s133, 8
        %s135 = scalar_lea.vmem %s0, %s134
      $region28: #{vae_forward.1} parent=23 // pred_fallthru
        _
    $region24: #{vae_forward.1} parent=5 // pred_fallthru
      _
    %p136 = scmp.le.s32.totalorder 1, %s9
    %p137 = scmp.lt.s32.totalorder %s9, 5
    %p138 = pnand %p136, %p137
    %p139 = pneg %p138
    // Predicated region
    $region29: #{vae_forward.1} parent=5 // pred_check
      _
    $region30: #{vae_forward.1} parent=5 // pred_check_branch
      %141 = sbr.rel (%p138) target = $region32
    $region31: #{vae_forward.1} parent=5 // pred_region
      %s142 = ssub.s32 %s9, 1
      %p143 = scmp.lt.s32.totalorder %s14, 3
      %s144 = scalar_select %p143, %s14, 3
      %s145 = smul.addr %s144, 3
      %s146 = smul.addr %s145, 8
      %s147 = scalar_lea.vmem %s0, %s146
      %p148 = pneg %p35
      %p149 = pneg %p32
      %p150 = pneg %p56
      %p151 = pneg %p53
      %p152 = pneg %p77
      %p153 = pneg %p74
      %p154 = pneg %p103
      %p155 = pneg %p100
      %p156 = scmp.lt.s32.totalorder %s14, 3
      %s157 = scalar_select %p156, %s14, 3
      %s158 = smul.addr %s157, 2
      %s159 = smul.addr %s158, 8
      %s160 = scalar_lea.vmem %s3, %s159
      %p161 = scmp.lt.s32.totalorder %s14, 3
      %s162 = scalar_select %p161, %s14, 3
      %s163 = smul.addr %s162, 3
      %s164 = smul.addr %s163, 8
      %s165 = scalar_lea.vmem %s0, %s164
      %p166 = scmp.lt.s32.totalorder %s14, 3
      %s167 = scalar_select %p166, %s14, 3
      %s168 = smul.addr %s167, 2
      %s169 = smul.addr %s168, 8
      %s170 = scalar_lea.vmem %s3, %s169
      %v172 = vld [vmem:[%s165] sm:$0xff]
      %v173 = vld [vmem:[%s165 + $0x8] sm:$0xff]
      %v174 = vld [vmem:[%s165 + $0x10] sm:$0xff]
      %v175 = vpack.c.bf16 %v172, %v172
      %v176 = vld [vmem:[%s1] sm:$0xf]
      %v177 = vld [vmem:[%s1 + $0x4] sm:$0xf]
      %v178 = vld [vmem:[%s1 + $0x8] sm:$0xf]
      %v179 = vld [vmem:[%s1 + $0xc] sm:$0xf]
      %v180 = vld [vmem:[%s1 + $0x10] sm:$0xf]
      %v181 = vld [vmem:[%s1 + $0x14] sm:$0xf]
      %v182 = vld [vmem:[%s1 + $0x18] sm:$0xf]
      %v183 = vld [vmem:[%s1 + $0x1c] sm:$0xf]
      %v192 = vunpack.c.l.b16 %v176
      %v193 = vunpack.c.l.b16 %v177
      %v194 = vunpack.c.l.b16 %v178
      %v195 = vunpack.c.l.b16 %v179
      %v196 = vunpack.c.l.b16 %v180
      %v197 = vunpack.c.l.b16 %v181
      %v198 = vunpack.c.l.b16 %v182
      %v199 = vunpack.c.l.b16 %v183
      %v200 = vpack.c.b16 %v193, %v192
      %v201 = vpack.c.b16 %v195, %v194
      %v202 = vpack.c.b16 %v197, %v196
      %v203 = vpack.c.b16 %v199, %v198
      %vm208 = vcmask 523264
      %v210 = vsel %vm208, %v175, 0
      %212 = vmatpush.bf16.msra.mxu0 0
      %213 = vmatpush.bf16.msra.mxu0 0
      %214 = vmatpush.bf16.msra.mxu0 0
      %215 = vmatpush.bf16.msra.mxu0 0
      %216 = vmatpush.bf16.msra.mxu0 %v203
      %217 = vmatpush.bf16.msra.mxu0 %v202
      %218 = vmatpush.bf16.msra.mxu0 %v201
      %219 = vmatpush.bf16.msra.mxu0 %v200
      %220 = vmatmul.bf16.gmra.mxu0 %v210
      %v221 = vpop.f32.mrf.mxu0
      %v222 = vadd.f32 0.0, %v221
      %v223 = vpop.f32.mrf.mxu0
      %224 = vdwg.mxu0
      %v225 = vrot.slane %v222, 4
      %v226 = vadd.f32 %v222, %v225
      %v227 = vrot.slane %v226, 2
      %v228 = vadd.f32 %v226, %v227
      %v229 = vrot.slane %v228, 1
      %v230 = vadd.f32 %v228, %v229
      %v231 = vrcp.pop 8.0
      %v232 = vmul.f32 8.0, %v231
      %v233 = vsub.f32 1.0, %v232
      %v234 = vmul.f32 %v231, %v233
      %v235 = vadd.f32 %v231, %v234
      %vm236 = vweird.f32 %v231
      %v237 = vsel %vm236, %v231, %v235
      %v238 = vmul.f32 %v230, %v237
      %v239 = vmul.f32 %v222, %v222
      %v240 = vrot.slane %v239, 4
      %v241 = vadd.f32 %v239, %v240
      %v242 = vrot.slane %v241, 2
      %v243 = vadd.f32 %v241, %v242
      %v244 = vrot.slane %v243, 1
      %v245 = vadd.f32 %v243, %v244
      %v246 = vmul.f32 %v245, %v237
      %v247 = vmul.f32 %v238, %v238
      %v248 = vsub.f32 %v246, %v247
      %v249 = vmax.f32 %v248, 0.0
      %v250 = vld [vmem:[%s2] sm:$0x1]
      %v251 = vadd.f32 %v249, 1e-05
      %v252 = vrsqrt.pop %v251
      %v253 = vmul.f32 %v252, %v251
      %v254 = vmul.f32 %v253, %v252
      %v255 = vmul.f32 0.5, %v254
      %v256 = vsub.f32 1.5, %v255
      %v257 = vmul.f32 %v252, %v256
      %vm258 = vweird.f32 %v251
      %vm259 = vweird.f32 %v252
      %vm260 = vmor %vm258, %vm259
      %v261 = vsel %vm260, %v252, %v257
      %v262 = vmul.f32 %v250, %v261
      %v263 = vld [vmem:[%s2 + $0x1] sm:$0x1]
      %v264 = vmul.f32 %v238, %v262
      %v265 = vsub.f32 %v263, %v264
      %v266 = vperm.slane %v262, 0
      %v267 = vmul.f32 %v222, %v266
      %v268 = vperm.slane %v265, 0
      %v269 = vadd.f32 %v267, %v268
      %v270 = vmax.f32 %v269, 0.0
      %v271 = vpack.c.bf16 %v270, %v270
      %s272 = scalar_lea.vmem %s1, 32
      %v273 = vld [vmem:[%s272] sm:$0xf]
      %v274 = vld [vmem:[%s272 + $0x4] sm:$0xf]
      %v275 = vld [vmem:[%s272 + $0x8] sm:$0xf]
      %v276 = vld [vmem:[%s272 + $0xc] sm:$0xf]
      %v277 = vld [vmem:[%s272 + $0x10] sm:$0xf]
      %v278 = vld [vmem:[%s272 + $0x14] sm:$0xf]
      %v279 = vld [vmem:[%s272 + $0x18] sm:$0xf]
      %v280 = vld [vmem:[%s272 + $0x1c] sm:$0xf]
      %v289 = vunpack.c.l.b16 %v273
      %v290 = vunpack.c.l.b16 %v274
      %v291 = vunpack.c.l.b16 %v275
      %v292 = vunpack.c.l.b16 %v276
      %v293 = vunpack.c.l.b16 %v277
      %v294 = vunpack.c.l.b16 %v278
      %v295 = vunpack.c.l.b16 %v279
      %v296 = vunpack.c.l.b16 %v280
      %v297 = vpack.c.b16 %v290, %v289
      %v298 = vpack.c.b16 %v292, %v291
      %v299 = vpack.c.b16 %v294, %v293
      %v300 = vpack.c.b16 %v296, %v295
      %v306 = vsel %vm208, %v271, 0
      %308 = vmatpush.bf16.msra.mxu0 0
      %309 = vmatpush.bf16.msra.mxu0 0
      %310 = vmatpush.bf16.msra.mxu0 0
      %311 = vmatpush.bf16.msra.mxu0 0
      %312 = vmatpush.bf16.msra.mxu0 %v300
      %313 = vmatpush.bf16.msra.mxu0 %v299
      %314 = vmatpush.bf16.msra.mxu0 %v298
      %315 = vmatpush.bf16.msra.mxu0 %v297
      %316 = vmatmul.bf16.gmra.mxu0 %v306
      %v317 = vpop.f32.mrf.mxu0
      %v318 = vadd.f32 0.0, %v317
      %v319 = vpop.f32.mrf.mxu0
      %320 = vdwg.mxu0
      %v321 = vrot.slane %v318, 4
      %v322 = vadd.f32 %v318, %v321
      %v323 = vrot.slane %v322, 2
      %v324 = vadd.f32 %v322, %v323
      %v325 = vrot.slane %v324, 1
      %v326 = vadd.f32 %v324, %v325
      %v327 = vmul.f32 %v326, %v237
      %v328 = vmul.f32 %v318, %v318
      %v329 = vrot.slane %v328, 4
      %v330 = vadd.f32 %v328, %v329
      %v331 = vrot.slane %v330, 2
      %v332 = vadd.f32 %v330, %v331
      %v333 = vrot.slane %v332, 1
      %v334 = vadd.f32 %v332, %v333
      %v335 = vmul.f32 %v334, %v237
      %v336 = vmul.f32 %v327, %v327
      %v337 = vsub.f32 %v335, %v336
      %v338 = vmax.f32 %v337, 0.0
      %v339 = vld [vmem:[%s2 + $0x2] sm:$0x1]
      %v340 = vadd.f32 %v338, 1e-05
      %v341 = vrsqrt.pop %v340
      %v342 = vmul.f32 %v341, %v340
      %v343 = vmul.f32 %v342, %v341
      %v344 = vmul.f32 0.5, %v343
      %v345 = vsub.f32 1.5, %v344
      %v346 = vmul.f32 %v341, %v345
      %vm347 = vweird.f32 %v340
      %vm348 = vweird.f32 %v341
      %vm349 = vmor %vm347, %vm348
      %v350 = vsel %vm349, %v341, %v346
      %v351 = vmul.f32 %v339, %v350
      %v352 = vld [vmem:[%s2 + $0x3] sm:$0x1]
      %v353 = vmul.f32 %v327, %v351
      %v354 = vsub.f32 %v352, %v353
      %v355 = vperm.slane %v351, 0
      %v356 = vmul.f32 %v318, %v355
      %v357 = vperm.slane %v354, 0
      %v358 = vadd.f32 %v356, %v357
      %v359 = vmax.f32 %v358, 0.0
      %v360 = vpack.c.bf16 %v359, %v359
      %s361 = scalar_lea.vmem %s1, 64
      %v362 = vld [vmem:[%s361] sm:$0xf]
      %v363 = vld [vmem:[%s361 + $0x4] sm:$0xf]
      %v364 = vld [vmem:[%s361 + $0x8] sm:$0xf]
      %v365 = vld [vmem:[%s361 + $0xc] sm:$0xf]
      %v366 = vld [vmem:[%s361 + $0x10] sm:$0xf]
      %v367 = vld [vmem:[%s361 + $0x14] sm:$0xf]
      %v368 = vld [vmem:[%s361 + $0x18] sm:$0xf]
      %v369 = vld [vmem:[%s361 + $0x1c] sm:$0xf]
      %v378 = vunpack.c.l.b16 %v362
      %v379 = vunpack.c.l.b16 %v363
      %v380 = vunpack.c.l.b16 %v364
      %v381 = vunpack.c.l.b16 %v365
      %v382 = vunpack.c.l.b16 %v366
      %v383 = vunpack.c.l.b16 %v367
      %v384 = vunpack.c.l.b16 %v368
      %v385 = vunpack.c.l.b16 %v369
      %v386 = vpack.c.b16 %v379, %v378
      %v387 = vpack.c.b16 %v381, %v380
      %v388 = vpack.c.b16 %v383, %v382
      %v389 = vpack.c.b16 %v385, %v384
      %v395 = vsel %vm208, %v360, 0
      %397 = vmatpush.bf16.msra.mxu0 0
      %398 = vmatpush.bf16.msra.mxu0 0
      %399 = vmatpush.bf16.msra.mxu0 0
      %400 = vmatpush.bf16.msra.mxu0 0
      %401 = vmatpush.bf16.msra.mxu0 %v389
      %402 = vmatpush.bf16.msra.mxu0 %v388
      %403 = vmatpush.bf16.msra.mxu0 %v387
      %404 = vmatpush.bf16.msra.mxu0 %v386
      %405 = vmatmul.bf16.gmra.mxu0 %v395
      %v406 = vpop.f32.mrf.mxu0
      %v407 = vadd.f32 0.0, %v406
      %v408 = vpop.f32.mrf.mxu0
      %409 = vdwg.mxu0
      %v410 = vrot.slane %v407, 4
      %v411 = vadd.f32 %v407, %v410
      %v412 = vrot.slane %v411, 2
      %v413 = vadd.f32 %v411, %v412
      %v414 = vrot.slane %v413, 1
      %v415 = vadd.f32 %v413, %v414
      %v416 = vmul.f32 %v415, %v237
      %v417 = vmul.f32 %v407, %v407
      %v418 = vrot.slane %v417, 4
      %v419 = vadd.f32 %v417, %v418
      %v420 = vrot.slane %v419, 2
      %v421 = vadd.f32 %v419, %v420
      %v422 = vrot.slane %v421, 1
      %v423 = vadd.f32 %v421, %v422
      %v424 = vmul.f32 %v423, %v237
      %v425 = vmul.f32 %v416, %v416
      %v426 = vsub.f32 %v424, %v425
      %v427 = vmax.f32 %v426, 0.0
      %v428 = vld [vmem:[%s2 + $0x4] sm:$0x1]
      %v429 = vadd.f32 %v427, 1e-05
      %v430 = vrsqrt.pop %v429
      %v431 = vmul.f32 %v430, %v429
      %v432 = vmul.f32 %v431, %v430
      %v433 = vmul.f32 0.5, %v432
      %v434 = vsub.f32 1.5, %v433
      %v435 = vmul.f32 %v430, %v434
      %vm436 = vweird.f32 %v429
      %vm437 = vweird.f32 %v430
      %vm438 = vmor %vm436, %vm437
      %v439 = vsel %vm438, %v430, %v435
      %v440 = vmul.f32 %v428, %v439
      %v441 = vld [vmem:[%s2 + $0x5] sm:$0x1]
      %v442 = vmul.f32 %v416, %v440
      %v443 = vsub.f32 %v441, %v442
      %v444 = vperm.slane %v440, 0
      %v445 = vmul.f32 %v407, %v444
      %v446 = vperm.slane %v443, 0
      %v447 = vadd.f32 %v445, %v446
      %v448 = vmax.f32 %v447, 0.0
      %v449 = vpack.c.bf16 %v448, %v448
      %s450 = scalar_lea.vmem %s1, 96
      %v451 = vld [vmem:[%s450] sm:$0xf]
      %v452 = vld [vmem:[%s450 + $0x4] sm:$0xf]
      %v453 = vld [vmem:[%s450 + $0x8] sm:$0xf]
      %v454 = vld [vmem:[%s450 + $0xc] sm:$0xf]
      %v455 = vld [vmem:[%s450 + $0x10] sm:$0xf]
      %v456 = vld [vmem:[%s450 + $0x14] sm:$0xf]
      %v457 = vld [vmem:[%s450 + $0x18] sm:$0xf]
      %v458 = vld [vmem:[%s450 + $0x1c] sm:$0xf]
      %v459 = vld [vmem:[%s2 + $0x6] sm:$0x1]
      %v460 = vperm.slane %v459, 0
      %v469 = vunpack.c.l.b16 %v451
      %v470 = vunpack.c.l.b16 %v452
      %v471 = vunpack.c.l.b16 %v453
      %v472 = vunpack.c.l.b16 %v454
      %v473 = vunpack.c.l.b16 %v455
      %v474 = vunpack.c.l.b16 %v456
      %v475 = vunpack.c.l.b16 %v457
      %v476 = vunpack.c.l.b16 %v458
      %v477 = vpack.c.b16 %v470, %v469
      %v478 = vpack.c.b16 %v472, %v471
      %v479 = vpack.c.b16 %v474, %v473
      %v480 = vpack.c.b16 %v476, %v475
      %v486 = vsel %vm208, %v449, 0
      %488 = vmatpush.bf16.msra.mxu0 0
      %489 = vmatpush.bf16.msra.mxu0 0
      %490 = vmatpush.bf16.msra.mxu0 0
      %491 = vmatpush.bf16.msra.mxu0 0
      %492 = vmatpush.bf16.msra.mxu0 %v480
      %493 = vmatpush.bf16.msra.mxu0 %v479
      %494 = vmatpush.bf16.msra.mxu0 %v478
      %495 = vmatpush.bf16.msra.mxu0 %v477
      %496 = vmatmul.bf16.gmra.mxu0 %v486
      %v497 = vpop.f32.mrf.mxu0
      %v498 = vadd.f32 %v460, %v497
      %v499 = vpop.f32.mrf.mxu0
      %500 = vdwg.mxu0
      %v501 = vmax.f32 %v498, 0.0
      %v502 = vand.u32 2147483647, %v498
      %v503 = vsub.f32 0.0, %v502
      %v504 = vmul.f32 %v503, 1.442695
      %v505 = vpow.pop %v504
      %v506 = vadd.f32 %v505, 1.0
      %v507 = vlog2.pop %v506
      %v508 = vmul.f32 %v507, 0.6931472
      %v509 = vmul.f32 -0.5, %v505
      %v510 = vadd.f32 %v509, 1.0
      %v511 = vmul.f32 %v510, %v505
      %v512 = vand.u32 2147483647, %v505
      %vm513 = vcmp.lt.f32.partialorder %v512, 0.0004427343
      %v514 = vsel %vm513, %v511, %v508
      %v515 = vadd.f32 %v501, %v514
      %v516 = vmul.f32 %v515, 0.5
      %v517 = vmul.f32 %v516, 1.442695
      %v518 = vpow.pop %v517
      %520 = vrot.lane.b32.xlu0 %v174, 64
      %v521 = vpop.permute.xlu0 %520
      %v523 = vmul.f32 %v518, %v521
      %525 = vrot.lane.b32.xlu0 %v523, 64
      %v526 = vpop.permute.xlu0 %525
      %v528 = vadd.f32 %v498, %v526
      %v529 = vadd.f32 %v528, %v173
      %v530 = vpack.c.bf16 %v529, %v529
      %s531 = scalar_lea.vmem %s1, 128
      %v532 = vld [vmem:[%s531] sm:$0xf]
      %v533 = vld [vmem:[%s531 + $0x4] sm:$0xf]
      %v534 = vld [vmem:[%s531 + $0x8] sm:$0xf]
      %v535 = vld [vmem:[%s531 + $0xc] sm:$0xf]
      %v536 = vld [vmem:[%s531 + $0x10] sm:$0xf]
      %v537 = vld [vmem:[%s531 + $0x14] sm:$0xf]
      %v538 = vld [vmem:[%s531 + $0x18] sm:$0xf]
      %v539 = vld [vmem:[%s531 + $0x1c] sm:$0xf]
      %v548 = vunpack.c.l.b16 %v532
      %v549 = vunpack.c.l.b16 %v533
      %v550 = vunpack.c.l.b16 %v534
      %v551 = vunpack.c.l.b16 %v535
      %v552 = vunpack.c.l.b16 %v536
      %v553 = vunpack.c.l.b16 %v537
      %v554 = vunpack.c.l.b16 %v538
      %v555 = vunpack.c.l.b16 %v539
      %v556 = vpack.c.b16 %v549, %v548
      %v557 = vpack.c.b16 %v551, %v550
      %v558 = vpack.c.b16 %v553, %v552
      %v559 = vpack.c.b16 %v555, %v554
      %v565 = vsel %vm208, %v530, 0
      %567 = vmatpush.bf16.msra.mxu0 0
      %568 = vmatpush.bf16.msra.mxu0 0
      %569 = vmatpush.bf16.msra.mxu0 0
      %570 = vmatpush.bf16.msra.mxu0 0
      %571 = vmatpush.bf16.msra.mxu0 %v559
      %572 = vmatpush.bf16.msra.mxu0 %v558
      %573 = vmatpush.bf16.msra.mxu0 %v557
      %574 = vmatpush.bf16.msra.mxu0 %v556
      %575 = vmatmul.bf16.gmra.mxu0 %v565
      %v576 = vpop.f32.mrf.mxu0
      %v577 = vadd.f32 0.0, %v576
      %v578 = vpop.f32.mrf.mxu0
      %579 = vdwg.mxu0
      %v580 = vrot.slane %v577, 4
      %v581 = vadd.f32 %v577, %v580
      %v582 = vrot.slane %v581, 2
      %v583 = vadd.f32 %v581, %v582
      %v584 = vrot.slane %v583, 1
      %v585 = vadd.f32 %v583, %v584
      %v586 = vmul.f32 %v585, %v237
      %v587 = vmul.f32 %v577, %v577
      %v588 = vrot.slane %v587, 4
      %v589 = vadd.f32 %v587, %v588
      %v590 = vrot.slane %v589, 2
      %v591 = vadd.f32 %v589, %v590
      %v592 = vrot.slane %v591, 1
      %v593 = vadd.f32 %v591, %v592
      %v594 = vmul.f32 %v593, %v237
      %v595 = vmul.f32 %v586, %v586
      %v596 = vsub.f32 %v594, %v595
      %v597 = vmax.f32 %v596, 0.0
      %v598 = vld [vmem:[%s2 + $0x7] sm:$0x1]
      %v599 = vadd.f32 %v597, 1e-05
      %v600 = vrsqrt.pop %v599
      %v601 = vmul.f32 %v600, %v599
      %v602 = vmul.f32 %v601, %v600
      %v603 = vmul.f32 0.5, %v602
      %v604 = vsub.f32 1.5, %v603
      %v605 = vmul.f32 %v600, %v604
      %vm606 = vweird.f32 %v599
      %vm607 = vweird.f32 %v600
      %vm608 = vmor %vm606, %vm607
      %v609 = vsel %vm608, %v600, %v605
      %v610 = vmul.f32 %v598, %v609
      %v611 = vld [vmem:[%s2 + $0x8] sm:$0x1]
      %v612 = vmul.f32 %v586, %v610
      %v613 = vsub.f32 %v611, %v612
      %v614 = vperm.slane %v610, 0
      %v615 = vmul.f32 %v577, %v614
      %v616 = vperm.slane %v613, 0
      %v617 = vadd.f32 %v615, %v616
      %v618 = vmax.f32 %v617, 0.0
      %v619 = vpack.c.bf16 %v618, %v618
      %s620 = scalar_lea.vmem %s1, 160
      %v621 = vld [vmem:[%s620] sm:$0xf]
      %v622 = vld [vmem:[%s620 + $0x4] sm:$0xf]
      %v623 = vld [vmem:[%s620 + $0x8] sm:$0xf]
      %v624 = vld [vmem:[%s620 + $0xc] sm:$0xf]
      %v625 = vld [vmem:[%s620 + $0x10] sm:$0xf]
      %v626 = vld [vmem:[%s620 + $0x14] sm:$0xf]
      %v627 = vld [vmem:[%s620 + $0x18] sm:$0xf]
      %v628 = vld [vmem:[%s620 + $0x1c] sm:$0xf]
      %v637 = vunpack.c.l.b16 %v621
      %v638 = vunpack.c.l.b16 %v622
      %v639 = vunpack.c.l.b16 %v623
      %v640 = vunpack.c.l.b16 %v624
      %v641 = vunpack.c.l.b16 %v625
      %v642 = vunpack.c.l.b16 %v626
      %v643 = vunpack.c.l.b16 %v627
      %v644 = vunpack.c.l.b16 %v628
      %v645 = vpack.c.b16 %v638, %v637
      %v646 = vpack.c.b16 %v640, %v639
      %v647 = vpack.c.b16 %v642, %v641
      %v648 = vpack.c.b16 %v644, %v643
      %v654 = vsel %vm208, %v619, 0
      %656 = vmatpush.bf16.msra.mxu0 0
      %657 = vmatpush.bf16.msra.mxu0 0
      %658 = vmatpush.bf16.msra.mxu0 0
      %659 = vmatpush.bf16.msra.mxu0 0
      %660 = vmatpush.bf16.msra.mxu0 %v648
      %661 = vmatpush.bf16.msra.mxu0 %v647
      %662 = vmatpush.bf16.msra.mxu0 %v646
      %663 = vmatpush.bf16.msra.mxu0 %v645
      %664 = vmatmul.bf16.gmra.mxu0 %v654
      %v665 = vpop.f32.mrf.mxu0
      %v666 = vadd.f32 0.0, %v665
      %v667 = vpop.f32.mrf.mxu0
      %668 = vdwg.mxu0
      %v669 = vrot.slane %v666, 4
      %v670 = vadd.f32 %v666, %v669
      %v671 = vrot.slane %v670, 2
      %v672 = vadd.f32 %v670, %v671
      %v673 = vrot.slane %v672, 1
      %v674 = vadd.f32 %v672, %v673
      %v675 = vmul.f32 %v674, %v237
      %v676 = vmul.f32 %v666, %v666
      %v677 = vrot.slane %v676, 4
      %v678 = vadd.f32 %v676, %v677
      %v679 = vrot.slane %v678, 2
      %v680 = vadd.f32 %v678, %v679
      %v681 = vrot.slane %v680, 1
      %v682 = vadd.f32 %v680, %v681
      %v683 = vmul.f32 %v682, %v237
      %v684 = vmul.f32 %v675, %v675
      %v685 = vsub.f32 %v683, %v684
      %v686 = vmax.f32 %v685, 0.0
      %v687 = vld [vmem:[%s2 + $0x9] sm:$0x1]
      %v688 = vadd.f32 %v686, 1e-05
      %v689 = vrsqrt.pop %v688
      %v690 = vmul.f32 %v689, %v688
      %v691 = vmul.f32 %v690, %v689
      %v692 = vmul.f32 0.5, %v691
      %v693 = vsub.f32 1.5, %v692
      %v694 = vmul.f32 %v689, %v693
      %vm695 = vweird.f32 %v688
      %vm696 = vweird.f32 %v689
      %vm697 = vmor %vm695, %vm696
      %v698 = vsel %vm697, %v689, %v694
      %v699 = vmul.f32 %v687, %v698
      %v700 = vld [vmem:[%s2 + $0xa] sm:$0x1]
      %v701 = vmul.f32 %v675, %v699
      %v702 = vsub.f32 %v700, %v701
      %v703 = vperm.slane %v699, 0
      %v704 = vmul.f32 %v666, %v703
      %v705 = vperm.slane %v702, 0
      %v706 = vadd.f32 %v704, %v705
      %v707 = vmax.f32 %v706, 0.0
      %v708 = vpack.c.bf16 %v707, %v707
      %s709 = scalar_lea.vmem %s1, 192
      %v710 = vld [vmem:[%s709] sm:$0xf]
      %v711 = vld [vmem:[%s709 + $0x4] sm:$0xf]
      %v712 = vld [vmem:[%s709 + $0x8] sm:$0xf]
      %v713 = vld [vmem:[%s709 + $0xc] sm:$0xf]
      %v714 = vld [vmem:[%s709 + $0x10] sm:$0xf]
      %v715 = vld [vmem:[%s709 + $0x14] sm:$0xf]
      %v716 = vld [vmem:[%s709 + $0x18] sm:$0xf]
      %v717 = vld [vmem:[%s709 + $0x1c] sm:$0xf]
      %v726 = vunpack.c.l.b16 %v710
      %v727 = vunpack.c.l.b16 %v711
      %v728 = vunpack.c.l.b16 %v712
      %v729 = vunpack.c.l.b16 %v713
      %v730 = vunpack.c.l.b16 %v714
      %v731 = vunpack.c.l.b16 %v715
      %v732 = vunpack.c.l.b16 %v716
      %v733 = vunpack.c.l.b16 %v717
      %v734 = vpack.c.b16 %v727, %v726
      %v735 = vpack.c.b16 %v729, %v728
      %v736 = vpack.c.b16 %v731, %v730
      %v737 = vpack.c.b16 %v733, %v732
      %v743 = vsel %vm208, %v708, 0
      %745 = vmatpush.bf16.msra.mxu0 0
      %746 = vmatpush.bf16.msra.mxu0 0
      %747 = vmatpush.bf16.msra.mxu0 0
      %748 = vmatpush.bf16.msra.mxu0 0
      %749 = vmatpush.bf16.msra.mxu0 %v737
      %750 = vmatpush.bf16.msra.mxu0 %v736
      %751 = vmatpush.bf16.msra.mxu0 %v735
      %752 = vmatpush.bf16.msra.mxu0 %v734
      %753 = vmatmul.bf16.gmra.mxu0 %v743
      %v754 = vpop.f32.mrf.mxu0
      %v755 = vadd.f32 0.0, %v754
      %v756 = vpop.f32.mrf.mxu0
      %757 = vdwg.mxu0
      %v758 = vrot.slane %v755, 4
      %v759 = vadd.f32 %v755, %v758
      %v760 = vrot.slane %v759, 2
      %v761 = vadd.f32 %v759, %v760
      %v762 = vrot.slane %v761, 1
      %v763 = vadd.f32 %v761, %v762
      %v764 = vmul.f32 %v763, %v237
      %v765 = vmul.f32 %v755, %v755
      %v766 = vrot.slane %v765, 4
      %v767 = vadd.f32 %v765, %v766
      %v768 = vrot.slane %v767, 2
      %v769 = vadd.f32 %v767, %v768
      %v770 = vrot.slane %v769, 1
      %v771 = vadd.f32 %v769, %v770
      %v772 = vmul.f32 %v771, %v237
      %v773 = vmul.f32 %v764, %v764
      %v774 = vsub.f32 %v772, %v773
      %v775 = vmax.f32 %v774, 0.0
      %v776 = vld [vmem:[%s2 + $0xb] sm:$0x1]
      %v777 = vadd.f32 %v775, 1e-05
      %v778 = vrsqrt.pop %v777
      %v779 = vmul.f32 %v778, %v777
      %v780 = vmul.f32 %v779, %v778
      %v781 = vmul.f32 0.5, %v780
      %v782 = vsub.f32 1.5, %v781
      %v783 = vmul.f32 %v778, %v782
      %vm784 = vweird.f32 %v777
      %vm785 = vweird.f32 %v778
      %vm786 = vmor %vm784, %vm785
      %v787 = vsel %vm786, %v778, %v783
      %v788 = vmul.f32 %v776, %v787
      %v789 = vld [vmem:[%s2 + $0xc] sm:$0x1]
      %v790 = vmul.f32 %v764, %v788
      %v791 = vsub.f32 %v789, %v790
      %v792 = vperm.slane %v788, 0
      %v793 = vmul.f32 %v755, %v792
      %v794 = vperm.slane %v791, 0
      %v795 = vadd.f32 %v793, %v794
      %v796 = vmax.f32 %v795, 0.0
      %v797 = vpack.c.bf16 %v796, %v796
      %s798 = scalar_lea.vmem %s1, 224
      %v799 = vld [vmem:[%s798] sm:$0xf]
      %v800 = vld [vmem:[%s798 + $0x4] sm:$0xf]
      %v801 = vld [vmem:[%s798 + $0x8] sm:$0xf]
      %v802 = vld [vmem:[%s798 + $0xc] sm:$0xf]
      %v803 = vld [vmem:[%s798 + $0x10] sm:$0xf]
      %v804 = vld [vmem:[%s798 + $0x14] sm:$0xf]
      %v805 = vld [vmem:[%s798 + $0x18] sm:$0xf]
      %v806 = vld [vmem:[%s798 + $0x1c] sm:$0xf]
      %v807 = vld [vmem:[%s2 + $0xd] sm:$0x1]
      %v808 = vperm.slane %v807, 0
      %v817 = vunpack.c.l.b16 %v799
      %v818 = vunpack.c.l.b16 %v800
      %v819 = vunpack.c.l.b16 %v801
      %v820 = vunpack.c.l.b16 %v802
      %v821 = vunpack.c.l.b16 %v803
      %v822 = vunpack.c.l.b16 %v804
      %v823 = vunpack.c.l.b16 %v805
      %v824 = vunpack.c.l.b16 %v806
      %v825 = vpack.c.b16 %v818, %v817
      %v826 = vpack.c.b16 %v820, %v819
      %v827 = vpack.c.b16 %v822, %v821
      %v828 = vpack.c.b16 %v824, %v823
      %v834 = vsel %vm208, %v797, 0
      %836 = vmatpush.bf16.msra.mxu0 0
      %837 = vmatpush.bf16.msra.mxu0 0
      %838 = vmatpush.bf16.msra.mxu0 0
      %839 = vmatpush.bf16.msra.mxu0 0
      %840 = vmatpush.bf16.msra.mxu0 %v828
      %841 = vmatpush.bf16.msra.mxu0 %v827
      %842 = vmatpush.bf16.msra.mxu0 %v826
      %843 = vmatpush.bf16.msra.mxu0 %v825
      %844 = vmatmul.bf16.gmra.mxu0 %v834
      %v845 = vpop.f32.mrf.mxu0
      %v846 = vadd.f32 %v808, %v845
      %v847 = vpop.f32.mrf.mxu0
      %848 = vdwg.mxu0
      %v849 = vxor.u32 %v846, 2147483648
      %v850 = vmul.f32 %v849, 1.442695
      %v851 = vpow.pop %v850
      %v852 = vadd.f32 %v851, 1.0
      %v853 = vrcp.pop %v852
      %v854 = vmul.f32 %v852, %v853
      %v855 = vsub.f32 1.0, %v854
      %v856 = vmul.f32 %v853, %v855
      %v857 = vadd.f32 %v853, %v856
      %vm858 = vweird.f32 %v852
      %vm859 = vweird.f32 %v853
      %vm860 = vmor %vm858, %vm859
      %v861 = vsel %vm860, %v853, %v857
      %v862 = vand.u32 2147483647, %v852
      %vm863 = vcmp.eq.f32.partialorder %v862, 8.507059e+37
      %v864 = vand.u32 %v852, 2147483648
      %v865 = vor.u32 1.1754944e-38, %v864
      %v866 = vsel %vm863, %v865, %v861
      %v867 = vmul.f32 1.0, %v866
      %868 = vst [vmem:[%s170] sm:$0xff] %v867
      %v869 = vsel %vm208, %v498, %v515
      %870 = vst [vmem:[%s170 + $0x8] sm:$0xff] %v869
      %p871 = scmp.lt.s32.totalorder %s14, 3
      %s872 = scalar_select %p871, %s14, 3
      %s873 = smul.addr %s872, 2
      %s874 = smul.addr %s873, 8
      %s875 = scalar_lea.vmem %s3, %s874
      // Predicated region
      $region33: #{vae_forward.1} parent=31 // pred_check
        %p876 = pneg %p100
      $region34: #{vae_forward.1} parent=31 // pred_check_branch
        %878 = sbr.rel (%p876) target = $region36
      $region35: #{vae_forward.1} parent=31 // pred_region
        _
      $region36: #{vae_forward.1} parent=31 // pred_fallthru
        _
    $region32: #{vae_forward.1} parent=5 // pred_fallthru
      _
    %p879 = scmp.le.s32.totalorder 2, %s9
    // Predicated region
    $region37: #{vae_forward.1} parent=5 // pred_check
      %p880 = pneg %p879
    $region38: #{vae_forward.1} parent=5 // pred_check_branch
      %882 = sbr.rel (%p880) target = $region40
    $region39: #{vae_forward.1} parent=5 // pred_region
      %s883 = ssub.s32 %s9, 2
      // Predicated region
      $region41: #{vae_forward.1} parent=39 // pred_check
        %p884 = pneg %p106
      $region42: #{vae_forward.1} parent=39 // pred_check_branch
        %886 = sbr.rel (%p884) target = $region44
      $region43: #{vae_forward.1} parent=39 // pred_region
        %p887 = scmp.lt.s32.totalorder %s15, 3
        %s888 = scalar_select %p887, %s15, 3
        %s889 = smul.addr %s888, 2
        %s890 = smul.addr %s889, 8
        %s891 = scalar_lea.vmem %s3, %s890
      $region44: #{vae_forward.1} parent=39 // pred_fallthru
        _
    $region40: #{vae_forward.1} parent=5 // pred_fallthru
      _
  $region6: #{vae_forward.1} parent=0 // loop_footer
    %s13 = sadd.s32 1, %s9
  $region7: #{vae_forward.1} parent=0 // loop_footer_branch
    %8 = sbr.rel target = $region3
  $region8: #{vae_forward.1} parent=0 // loop_exit
    _

</llo_original>
